<compile_context>
chip_gen: v7x
topology: tpu7x:2x2x1
jax: 0.10.0
libtpu: 0.0.40
codegen_flags: <defaults>
</compile_context>

<pallas_src>
import functools

import jax
import jax.numpy as jnp
from jax.experimental import pallas as pl
from jax.experimental.pallas import tpu as pltpu


def _vq_kernel(x_ref, w_ref, w2h_ref, q_ref, sse_ref, *, total_s, tile_s):
    """One grid step processes a (1, C, TILE_S) block of the (N, C, S_pad) input.

    x_ref:   (1, C, TILE_S)  input block (channels on sublanes, spatial on lanes)
    w_ref:   (K, C)          codebook, resident + single-buffered
    w2h_ref: (K, 1)          0.5 * ||w||^2 per codebook row (hoisted in wrapper)
    q_ref:   (1, C, TILE_S)  quantized block
    sse_ref: (1, 8, 128)     per-step SSE scalar broadcast over one dense tile
    """
    x = x_ref[0].astype(jnp.float32)                       # (C, TILE_S)
    w = w_ref[...]                                         # (K, C) f32
    w2h = w2h_ref[...]                                     # (K, 1) f32
    num_embeddings = w.shape[0]

    # score(k, s) = 0.5*||w_k||^2 - <w_k, x_s>
    #             = 0.5*(||x_s - w_k||^2 - ||x_s||^2)  -> same argmin as the
    # full squared distance (x^2 is constant per spatial column).
    xw = jnp.dot(w, x, preferred_element_type=jnp.float32)  # (K, TILE_S) MXU
    score = w2h - xw                                        # one VPU pass

    # argmin over K (first occurrence, matching torch.argmin) -> one-hot.
    iota_k = jax.lax.broadcasted_iota(jnp.int32, score.shape, 0)
    min_s = jnp.min(score, axis=0, keepdims=True)           # (1, TILE_S)
    idx = jnp.min(jnp.where(score == min_s, iota_k, num_embeddings),
                  axis=0, keepdims=True)                    # (1, TILE_S)
    onehot = (iota_k == idx).astype(jnp.float32)            # (K, TILE_S)

    # quantized = w^T @ onehot, contracting K directly on the MXU (no
    # materialized transposed codebook); f32 operands keep exact codebook rows.
    q = jax.lax.dot_general(w, onehot,
                            dimension_numbers=(((0,), (0,)), ((), ())),
                            preferred_element_type=jnp.float32)  # (C, TILE_S)
    q_ref[...] = q[None].astype(q_ref.dtype)

    # Per-step SSE scalar (sum over channels and lanes); padded lanes masked.
    diff = q - x
    ssq = jnp.sum(diff * diff, axis=0, keepdims=True)        # (1, TILE_S)
    if total_s % tile_s != 0:
        col = (pl.program_id(1) * tile_s
               + jax.lax.broadcasted_iota(jnp.int32, ssq.shape, 1))
        ssq = jnp.where(col < total_s, ssq, 0.0)
    tile_sse = jnp.sum(ssq, axis=1, keepdims=True)            # (1, 1)
    sse_ref[...] = jnp.broadcast_to(tile_sse, (8, 128))[None]


def _choose_tile_s(s, n, num_embeddings, embedding_dim):
    """Pick a 128-aligned spatial tile from a generation-aware VMEM budget.

    Returns (tile_s, vmem_limit_bytes).
    """
    try:
        cap = int(pltpu.get_tpu_info().vmem_capacity_bytes)
    except Exception:  # pragma: no cover - conservative fallback (v7x 64 MiB)
        cap = 64 << 20
    # Per-step temporary budget: ~16 MiB on v7x (64 MiB VMEM), ~32 MiB on
    # v5e/v6e (128 MiB), never below v5e's 16 MiB default scoped limit.
    budget = max(16 << 20, cap // 4)

    # Live per-step VMEM per spatial lane:
    #   ~4 (K, TILE_S) f32-sized temporaries (score, iota, where(), onehot)
    #   + double-buffered (C, TILE_S) input and output blocks.
    per_lane = 4 * num_embeddings * 4 + 2 * 2 * embedding_dim * 4
    # Resident (single-buffered) codebook + 0.5*||w||^2.
    resident = num_embeddings * embedding_dim * 4 + num_embeddings * 4

    s128 = -(-s // 128) * 128
    avail = max(budget - resident, 128 * per_lane)
    tile_s = max(128, min((avail // per_lane) // 128 * 128, s128))

    # v7x has 2 TensorCores: for single-image calls make sure the spatial axis
    # still yields >=2 parallel grid steps (but never drop below 512 lanes,
    # where per-step overhead starts dominating).
    if n == 1 and tile_s >= s128 and s128 >= 1024:
        tile_s = max(512, (-(-s128 // 256)) * 128)

    vmem_limit = int(min(cap,
                         max(resident + per_lane * tile_s + (4 << 20),
                             32 << 20)))
    return tile_s, vmem_limit


@functools.partial(jax.jit, static_argnames=("commitment_cost",))
def vector_quantizer_forward(inputs_nchw, embedding_weight, commitment_cost):
    """Forward pass of VectorQuantizer.

    inputs_nchw:      (N, C, H, W) float32, C == embedding_dim
    embedding_weight: (num_embeddings, embedding_dim) float32
    returns: (quantized_nchw (N, C, H, W), loss scalar)
    """
    n, c, h, w_sp = inputs_nchw.shape
    num_embeddings, embedding_dim = embedding_weight.shape
    assert c == embedding_dim
    s = h * w_sp

    # Free reshape (trailing-dim merge, no HBM transpose): NCHW -> (N, C, S).
    x3 = inputs_nchw.reshape(n, c, s)

    # Hoist codebook-invariant work out of the kernel loop.
    w_f32 = embedding_weight.astype(jnp.float32)                  # (K, D)
    w2h = 0.5 * jnp.sum(w_f32 * w_f32, axis=1, keepdims=True)     # (K, 1)

    tile_s, vmem_limit = _choose_tile_s(s, n, num_embeddings, embedding_dim)
    num_tiles = -(-s // tile_s)
    s_pad = num_tiles * tile_s
    if s_pad != s:
        x3 = jnp.pad(x3, ((0, 0), (0, 0), (0, s_pad - s)))
    grid = (n, num_tiles)

    kernel = functools.partial(_vq_kernel, total_s=s, tile_s=tile_s)

    # NOTE: for very large codebooks (e.g. K=8192, D=512) the K axis should be
    # tiled with a running (min, argmin) carry instead of a resident (K, D).
    quantized3, sse_tiles = pl.pallas_call(
        kernel,
        out_shape=(
            jax.ShapeDtypeStruct((n, c, s_pad), inputs_nchw.dtype),
            jax.ShapeDtypeStruct((n, 8, num_tiles * 128), jnp.float32),
        ),
        grid_spec=pltpu.PrefetchScalarGridSpec(
            num_scalar_prefetch=0,
            grid=grid,
            in_specs=[
                pl.BlockSpec((1, c, tile_s), lambda b, t: (b, 0, t)),
                pl.BlockSpec((num_embeddings, embedding_dim),
                             lambda b, t: (0, 0),
                             pipeline_mode=pl.Buffered(1)),
                pl.BlockSpec((num_embeddings, 1),
                             lambda b, t: (0, 0),
                             pipeline_mode=pl.Buffered(1)),
            ],
            out_specs=[
                pl.BlockSpec((1, c, tile_s), lambda b, t: (b, 0, t)),
                pl.BlockSpec((1, 8, 128), lambda b, t: (b, 0, t)),
            ],
        ),
        compiler_params=pltpu.CompilerParams(
            dimension_semantics=("parallel", "parallel"),
            vmem_limit_bytes=vmem_limit),
    )(x3, w_f32, w2h)

    # Each (b, t) tile holds its SSE scalar broadcast over (8, 128); pick one
    # copy per tile and reduce.
    sse_total = jnp.sum(sse_tiles[:, 0, ::128])
    mse = sse_total / jnp.float32(n * c * s)
    # e_latent_loss == q_latent_loss == mse in the forward pass (detach only
    # affects gradients), so loss = q + commitment * e = (1 + commitment) * mse.
    loss = (1.0 + commitment_cost) * mse

    # Straight-through estimator: inputs + (quantized - inputs).detach()
    # equals quantized numerically in the forward pass.
    q3 = quantized3[:, :, :s] if s_pad != s else quantized3
    quantized_nchw = q3.reshape(n, c, h, w_sp)
    return quantized_nchw, loss


def _reference_forward(inputs_nchw, embedding_weight, commitment_cost):
    """Pure-JAX reference mirroring the PyTorch forward (for verification)."""
    inputs = jnp.transpose(inputs_nchw, (0, 2, 3, 1))
    flat = inputs.reshape(-1, embedding_weight.shape[1])
    dist = (jnp.sum(flat ** 2, axis=1, keepdims=True)
            + jnp.sum(embedding_weight ** 2, axis=1)
            - 2.0 * flat @ embedding_weight.T)
    idx = jnp.argmin(dist, axis=1)
    quantized = embedding_weight[idx].reshape(inputs.shape)
    mse = jnp.mean((quantized - inputs) ** 2)
    loss = mse + commitment_cost * mse
    q_nchw = jnp.transpose(quantized, (0, 3, 1, 2))
    return q_nchw, loss


if __name__ == "__main__":
    # Module hyperparameters (small, consistent with the forward pass).
    num_embeddings = 8
    embedding_dim = 4          # == input channels C
    commitment_cost = 0.25

    key = jax.random.PRNGKey(0)
    k_x, k_w = jax.random.split(key)

    # Deterministic parameter init: uniform(-1/K, 1/K), as in the PyTorch module.
    embedding_weight = jax.random.uniform(
        k_w, (num_embeddings, embedding_dim), dtype=jnp.float32,
        minval=-1.0 / num_embeddings, maxval=1.0 / num_embeddings)

    # Input: NCHW, batch=2, channels=4, spatial=16x16  (S = 256 per image).
    x = jax.random.normal(k_x, (2, 4, 16, 16), dtype=jnp.float32)

    quantized, loss = vector_quantizer_forward(
        x, embedding_weight, commitment_cost)
    quantized = jax.block_until_ready(quantized)
    loss = jax.block_until_ready(loss)

    # Sanity check against the pure-JAX reference.
    q_ref, loss_ref = _reference_forward(x, embedding_weight, commitment_cost)
    assert quantized.shape == x.shape
    assert jnp.allclose(quantized, q_ref, atol=1e-5, rtol=1e-5)
    assert jnp.allclose(loss, loss_ref, atol=1e-5, rtol=1e-5)

    print("KERNEL_OK")
</pallas_src>

<mosaic_0001>
module attributes {stable_mosaic.version = 11 : i64} {
  func.func @_vq_kernel(%arg0: i32, %arg1: i32, %arg2: memref<1x4x256xf32, #tpu.memory_space<vmem>>, %arg3: memref<8x4xf32, #tpu.memory_space<vmem>>, %arg4: memref<8x1xf32, #tpu.memory_space<vmem>>, %arg5: memref<1x4x256xf32, #tpu.memory_space<vmem>>, %arg6: memref<1x8x128xf32, #tpu.memory_space<vmem>>) attributes {dimension_semantics = [#tpu.dimension_semantics<parallel>, #tpu.dimension_semantics<parallel>], iteration_bounds = array<i64: 2, 1>, scalar_prefetch = 0 : i64, scratch_operands = 0 : i64, tpu.core_type = #tpu.core_type<tc>, window_params = [{transform_indices = @transform_0, window_bounds = array<i64: 1, 4, 256>}, {pipeline_mode = #tpu.pipeline_mode<synchronous>, transform_indices = @transform_1, window_bounds = array<i64: 8, 4>}, {pipeline_mode = #tpu.pipeline_mode<synchronous>, transform_indices = @transform_2, window_bounds = array<i64: 8, 1>}, {transform_indices = @transform_3, window_bounds = array<i64: 1, 4, 256>}, {transform_indices = @transform_4, window_bounds = array<i64: 1, 8, 128>}]} {
    %c0 = arith.constant 0 : index
    %c0_0 = arith.constant 0 : index
    %c0_1 = arith.constant 0 : index
    %0 = vector.load %arg2[%c0, %c0_0, %c0_1] : memref<1x4x256xf32, #tpu.memory_space<vmem>>, vector<1x4x256xf32>
    %1 = vector.shape_cast %0 : vector<1x4x256xf32> to vector<4x256xf32>
    %c0_2 = arith.constant 0 : index
    %c0_3 = arith.constant 0 : index
    %2 = vector.load %arg3[%c0_2, %c0_3] : memref<8x4xf32, #tpu.memory_space<vmem>>, vector<8x4xf32>
    %c0_4 = arith.constant 0 : index
    %c0_5 = arith.constant 0 : index
    %3 = vector.load %arg4[%c0_4, %c0_5] : memref<8x1xf32, #tpu.memory_space<vmem>>, vector<8x1xf32>
    %cst = arith.constant dense<0.000000e+00> : vector<8x256xf32>
    %4 = tpu.matmul %2, %1, %cst {dimension_numbers = #tpu.dot_dimension_numbers<[1], [0], [0], [1], [0, 0, 1, 1], [], []>} : vector<8x4xf32>, vector<4x256xf32>, vector<8x256xf32> -> vector<8x256xf32>
    %5 = vector.broadcast %3 : vector<8x1xf32> to vector<8x256xf32>
    %6 = arith.subf %5, %4 : vector<8x256xf32>
    %7 = tpu.iota {dimensions = array<i32: 0>} : vector<8x256xi32>
    %cst_6 = arith.constant dense<0x7F800000> : vector<256xf32>
    %8 = vector.multi_reduction <minimumf>, %6, %cst_6 [0] : vector<8x256xf32> to vector<256xf32>
    %9 = vector.shape_cast %8 : vector<256xf32> to vector<1x256xf32>
    %10 = vector.broadcast %9 : vector<1x256xf32> to vector<8x256xf32>
    %11 = arith.cmpf oeq, %6, %10 : vector<8x256xf32>
    %c8_i32 = arith.constant 8 : i32
    %12 = vector.broadcast %c8_i32 : i32 to vector<8x256xi32>
    %13 = arith.select %11, %7, %12 : vector<8x256xi1>, vector<8x256xi32>
    %cst_7 = arith.constant dense<2147483647> : vector<256xi32>
    %14 = vector.multi_reduction <minsi>, %13, %cst_7 [0] : vector<8x256xi32> to vector<256xi32>
    %15 = vector.shape_cast %14 : vector<256xi32> to vector<1x256xi32>
    %16 = vector.broadcast %15 : vector<1x256xi32> to vector<8x256xi32>
    %17 = arith.cmpi eq, %7, %16 : vector<8x256xi32>
    %18 = arith.extui %17 : vector<8x256xi1> to vector<8x256xi32>
    %19 = arith.sitofp %18 : vector<8x256xi32> to vector<8x256xf32>
    %cst_8 = arith.constant dense<0.000000e+00> : vector<4x256xf32>
    %20 = tpu.matmul %2, %19, %cst_8 {dimension_numbers = #tpu.dot_dimension_numbers<[0], [0], [1], [1], [0, 1, 1, 1], [], []>} : vector<8x4xf32>, vector<8x256xf32>, vector<4x256xf32> -> vector<4x256xf32>
    %21 = vector.shape_cast %20 : vector<4x256xf32> to vector<1x4x256xf32>
    %c0_9 = arith.constant 0 : index
    %c0_10 = arith.constant 0 : index
    %c0_11 = arith.constant 0 : index
    %22 = vector.load %arg5[%c0_9, %c0_10, %c0_11] : memref<1x4x256xf32, #tpu.memory_space<vmem>>, vector<1x4x256xf32>
    tpu.vector_store %arg5[%c0_9, %c0_10, %c0_11], %21 {strides = array<i32>} : memref<1x4x256xf32, #tpu.memory_space<vmem>>, vector<1x4x256xf32>,
    %23 = arith.subf %20, %1 : vector<4x256xf32>
    %24 = arith.mulf %23, %23 : vector<4x256xf32>
    %cst_12 = arith.constant dense<0.000000e+00> : vector<256xf32>
    %25 = vector.multi_reduction <add>, %24, %cst_12 [0] : vector<4x256xf32> to vector<256xf32>
    %26 = vector.shape_cast %25 : vector<256xf32> to vector<1x256xf32>
    %cst_13 = arith.constant dense<0.000000e+00> : vector<1xf32>
    %27 = vector.multi_reduction <add>, %26, %cst_13 [1] : vector<1x256xf32> to vector<1xf32>
    %28 = vector.shape_cast %27 : vector<1xf32> to vector<1x1xf32>
    %29 = vector.shape_cast %28 : vector<1x1xf32> to vector<1x1xf32>
    %30 = vector.broadcast %29 : vector<1x1xf32> to vector<8x128xf32>
    %31 = vector.shape_cast %30 : vector<8x128xf32> to vector<1x8x128xf32>
    %c0_14 = arith.constant 0 : index
    %c0_15 = arith.constant 0 : index
    %c0_16 = arith.constant 0 : index
    %32 = vector.load %arg6[%c0_14, %c0_15, %c0_16] : memref<1x8x128xf32, #tpu.memory_space<vmem>>, vector<1x8x128xf32>
    tpu.vector_store %arg6[%c0_14, %c0_15, %c0_16], %31 {strides = array<i32>} : memref<1x8x128xf32, #tpu.memory_space<vmem>>, vector<1x8x128xf32>,
    return
  }
  func.func @transform_0(%arg0: i32, %arg1: i32) -> (i32, i32, i32) {
    %c0_i32 = arith.constant 0 : i32
    %c0_i32_0 = arith.constant 0 : i32
    return %arg0, %c0_i32, %arg1 : i32, i32, i32
  }
  func.func @transform_1(%arg0: i32, %arg1: i32) -> (i32, i32) {
    %c0_i32 = arith.constant 0 : i32
    %c0_i32_0 = arith.constant 0 : i32
    %c0_i32_1 = arith.constant 0 : i32
    return %c0_i32, %c0_i32_0 : i32, i32
  }
  func.func @transform_2(%arg0: i32, %arg1: i32) -> (i32, i32) {
    %c0_i32 = arith.constant 0 : i32
    %c0_i32_0 = arith.constant 0 : i32
    %c0_i32_1 = arith.constant 0 : i32
    return %c0_i32, %c0_i32_0 : i32, i32
  }
  func.func @transform_3(%arg0: i32, %arg1: i32) -> (i32, i32, i32) {
    %c0_i32 = arith.constant 0 : i32
    %c0_i32_0 = arith.constant 0 : i32
    return %arg0, %c0_i32, %arg1 : i32, i32, i32
  }
  func.func @transform_4(%arg0: i32, %arg1: i32) -> (i32, i32, i32) {
    %c0_i32 = arith.constant 0 : i32
    %c0_i32_0 = arith.constant 0 : i32
    return %arg0, %c0_i32, %arg1 : i32, i32, i32
  }
}

</mosaic_0001>

<llo_original>
// kernel: vector_quantizer_forward.1
$region0: #{vector_quantizer_forward.1}
  #allocation0 [shape = 'u32[]', space=smem, size = 0x4, offset = 0x4, fixed_abs, tag = 'smem constant byte address 0x4 - core index']
  #allocation1 [shape = 'u32[144,128]{1,0:T(1,128)}', space=vmem, size = 0x12000, scoped, tag = 'internal scratch']
  %s0 = inlined_call_operand.vmem [shape: f32[2,4,256], index: 0, kind: input, shape index: {}]
  %s1 = inlined_call_operand.vmem [shape: f32[8,4], index: 1, kind: input, shape index: {}]
  %s2 = inlined_call_operand.vmem [shape: f32[8,1], index: 2, kind: input, shape index: {}]
  %s3 = inlined_call_operand.vmem [shape: f32[2,4,256], index: 3, kind: output, shape index: {0}]
  %s4 = inlined_call_operand.vmem [shape: f32[2,8,128], index: 4, kind: output, shape index: {1}]
  %5 = xla_tuple %s3, %s4
  %s6 = sld [smem:[#allocation0]]
  $region53: #{vector_quantizer_forward.1} parent=0
    _
  %s8 = ssub.s32 1, %s6
  %s9 = scalar_select 0, %s8, %s6
  loop: start=0, step=1, limit=4
  $region2: #{vector_quantizer_forward.1} parent=0 // loop_pre_header
    _
  $region3: #{vector_quantizer_forward.1} parent=0 // loop_header
    %s11 = sphi 0, %s15
    %p12 = scmp.ge.s32.totalorder %s11, 4
    %s18 = sphi 0, %s30
    %s19 = sphi 0, %s26
    %s20 = sphi 0, %s18
    %s21 = sphi 0, %s19
    %s22 = sphi 0, %s20
    %s23 = sphi 0, %s21
    %s35 = sphi 0, %s37
    %s38 = sphi 0, %s35
    %s39 = sphi 0, %s38
    %s55 = sphi 0, %s39
    %s59 = sphi 0, %s59
    %s61 = sphi 0, %s59
    %s62 = sphi 0, %s61
    %s76 = sphi 0, %s62
    %s80 = sphi 0, %s80
    %s82 = sphi 0, %s80
    %s83 = sphi 0, %s82
    %s97 = sphi 0, %s83
    %s105 = sphi 0, %s107
    %s108 = sphi 0, %s105
    %s109 = sphi 0, %s108
    %s125 = sphi 0, %s109
    %s133 = sphi 0, %s135
    %s136 = sphi 0, %s133
    %s137 = sphi 0, %s136
    %s153 = sphi 0, %s137
  $region4: #{vector_quantizer_forward.1} parent=0 // loop_header_branch
    %14 = sbr.rel (%p12) target = $region8
  $region5: #{vector_quantizer_forward.1} parent=0 // loop_body
    %s16 = ssub.s32 %s11, 1
    %s17 = ssub.s32 %s11, 2
    %s24 = sadd.s32 1, %s19
    %p25 = scmp.ge.s32.totalorder %s24, 1
    %s26 = scalar_select %p25, 0, %s24
    %s27 = sadd.s32 1, %s18
    %s28 = scalar_select %p25, %s27, %s18
    %p29 = scmp.ge.s32.totalorder %s28, 2
    %s30 = scalar_select %p29, 0, %s28
    %s31 = ssub.s32 %s18, %s30
    %s32 = ssub.s32 %s19, %s26
    %s33 = sor.u32 %s31, %s32
    %p34 = scmp.eq.s32.totalorder %s33, 0
    %s36 = sadd.s32 %s35, 1
    %s37 = scalar_select %p34, %s35, %s36
    %p40 = pneg %p34
    %p41 = scmp.eq.s32.totalorder %s11, 1
    %p42 = por %p40, %p41
    %p43 = scmp.ne.s32.totalorder %s35, %s38
    %p44 = scmp.eq.s32.totalorder %s11, 0
    %p45 = por %p43, %p44
    %p46 = scmp.ne.s32.totalorder %s35, %s38
    %p47 = scmp.eq.s32.totalorder %s16, 1
    %p48 = por %p46, %p47
    %p49 = scmp.ne.s32.totalorder %s38, %s39
    %p50 = scmp.eq.s32.totalorder %s16, 0
    %p51 = por %p49, %p50
    %p52 = scmp.ne.s32.totalorder %s38, %s39
    %p53 = scmp.eq.s32.totalorder %s17, 1
    %p54 = por %p52, %p53
    %p56 = scmp.ne.s32.totalorder %s39, %s55
    %p57 = scmp.eq.s32.totalorder %s17, 0
    %p58 = por %p56, %p57
    %s60 = sadd.s32 %s59, 1
    %p63 = scmp.eq.s32.totalorder %s11, 1
    %p64 = scmp.ne.s32.totalorder %s59, %s61
    %p65 = scmp.eq.s32.totalorder %s11, 0
    %p66 = por %p64, %p65
    %p67 = scmp.ne.s32.totalorder %s59, %s61
    %p68 = scmp.eq.s32.totalorder %s16, 1
    %p69 = por %p67, %p68
    %p70 = scmp.ne.s32.totalorder %s61, %s62
    %p71 = scmp.eq.s32.totalorder %s16, 0
    %p72 = por %p70, %p71
    %p73 = scmp.ne.s32.totalorder %s61, %s62
    %p74 = scmp.eq.s32.totalorder %s17, 1
    %p75 = por %p73, %p74
    %p77 = scmp.ne.s32.totalorder %s62, %s76
    %p78 = scmp.eq.s32.totalorder %s17, 0
    %p79 = por %p77, %p78
    %s81 = sadd.s32 %s80, 1
    %p84 = scmp.eq.s32.totalorder %s11, 1
    %p85 = scmp.ne.s32.totalorder %s80, %s82
    %p86 = scmp.eq.s32.totalorder %s11, 0
    %p87 = por %p85, %p86
    %p88 = scmp.ne.s32.totalorder %s80, %s82
    %p89 = scmp.eq.s32.totalorder %s16, 1
    %p90 = por %p88, %p89
    %p91 = scmp.ne.s32.totalorder %s82, %s83
    %p92 = scmp.eq.s32.totalorder %s16, 0
    %p93 = por %p91, %p92
    %p94 = scmp.ne.s32.totalorder %s82, %s83
    %p95 = scmp.eq.s32.totalorder %s17, 1
    %p96 = por %p94, %p95
    %p98 = scmp.ne.s32.totalorder %s83, %s97
    %p99 = scmp.eq.s32.totalorder %s17, 0
    %p100 = por %p98, %p99
    %s101 = ssub.s32 %s18, %s30
    %s102 = ssub.s32 %s19, %s26
    %s103 = sor.u32 %s101, %s102
    %p104 = scmp.eq.s32.totalorder %s103, 0
    %s106 = sadd.s32 %s105, 1
    %s107 = scalar_select %p104, %s105, %s106
    %p110 = pneg %p104
    %p111 = scmp.eq.s32.totalorder %s11, 1
    %p112 = por %p110, %p111
    %p113 = scmp.ne.s32.totalorder %s105, %s108
    %p114 = scmp.eq.s32.totalorder %s11, 0
    %p115 = por %p113, %p114
    %p116 = scmp.ne.s32.totalorder %s105, %s108
    %p117 = scmp.eq.s32.totalorder %s16, 1
    %p118 = por %p116, %p117
    %p119 = scmp.ne.s32.totalorder %s108, %s109
    %p120 = scmp.eq.s32.totalorder %s16, 0
    %p121 = por %p119, %p120
    %p122 = scmp.ne.s32.totalorder %s108, %s109
    %p123 = scmp.eq.s32.totalorder %s17, 1
    %p124 = por %p122, %p123
    %p126 = scmp.ne.s32.totalorder %s109, %s125
    %p127 = scmp.eq.s32.totalorder %s17, 0
    %p128 = por %p126, %p127
    %s129 = ssub.s32 %s18, %s30
    %s130 = ssub.s32 %s19, %s26
    %s131 = sor.u32 %s129, %s130
    %p132 = scmp.eq.s32.totalorder %s131, 0
    %s134 = sadd.s32 %s133, 1
    %s135 = scalar_select %p132, %s133, %s134
    %p138 = pneg %p132
    %p139 = scmp.eq.s32.totalorder %s11, 1
    %p140 = por %p138, %p139
    %p141 = scmp.ne.s32.totalorder %s133, %s136
    %p142 = scmp.eq.s32.totalorder %s11, 0
    %p143 = por %p141, %p142
    %p144 = scmp.ne.s32.totalorder %s133, %s136
    %p145 = scmp.eq.s32.totalorder %s16, 1
    %p146 = por %p144, %p145
    %p147 = scmp.ne.s32.totalorder %s136, %s137
    %p148 = scmp.eq.s32.totalorder %s16, 0
    %p149 = por %p147, %p148
    %p150 = scmp.ne.s32.totalorder %s136, %s137
    %p151 = scmp.eq.s32.totalorder %s17, 1
    %p152 = por %p150, %p151
    %p154 = scmp.ne.s32.totalorder %s137, %s153
    %p155 = scmp.eq.s32.totalorder %s17, 0
    %p156 = por %p154, %p155
    %p157 = scmp.le.s32.totalorder 1, %s11
    %p158 = scmp.lt.s32.totalorder %s11, 3
    %p159 = pnand %p157, %p158
    %p160 = pneg %p159
    // Predicated region
    $region9: #{vector_quantizer_forward.1} parent=5 // pred_check
      _
    $region10: #{vector_quantizer_forward.1} parent=5 // pred_check_branch
      %162 = sbr.rel (%p159) target = $region12
    $region11: #{vector_quantizer_forward.1} parent=5 // pred_region
      %s163 = ssub.s32 %s11, 1
      // Predicated region
      $region13: #{vector_quantizer_forward.1} parent=11 // pred_check
        %p164 = pneg %p72
      $region14: #{vector_quantizer_forward.1} parent=11 // pred_check_branch
        %166 = sbr.rel (%p164) target = $region16
      $region15: #{vector_quantizer_forward.1} parent=11 // pred_region
        _
      $region16: #{vector_quantizer_forward.1} parent=11 // pred_fallthru
        _
      // Predicated region
      $region17: #{vector_quantizer_forward.1} parent=11 // pred_check
        %p167 = pneg %p93
      $region18: #{vector_quantizer_forward.1} parent=11 // pred_check_branch
        %169 = sbr.rel (%p167) target = $region20
      $region19: #{vector_quantizer_forward.1} parent=11 // pred_region
        _
      $region20: #{vector_quantizer_forward.1} parent=11 // pred_fallthru
        _
    $region12: #{vector_quantizer_forward.1} parent=5 // pred_fallthru
      _
    %p170 = scmp.lt.s32.totalorder %s11, 2
    // Predicated region
    $region21: #{vector_quantizer_forward.1} parent=5 // pred_check
      %p171 = pneg %p170
    $region22: #{vector_quantizer_forward.1} parent=5 // pred_check_branch
      %173 = sbr.rel (%p171) target = $region24
    $region23: #{vector_quantizer_forward.1} parent=5 // pred_region
      // Predicated region
      $region25: #{vector_quantizer_forward.1} parent=23 // pred_check
        %p174 = pneg %p45
      $region26: #{vector_quantizer_forward.1} parent=23 // pred_check_branch
        %176 = sbr.rel (%p174) target = $region28
      $region27: #{vector_quantizer_forward.1} parent=23 // pred_region
        %s177 = smul.u32 2, %s19
        %p178 = scmp.lt.s32.totalorder %s18, 1
        %s179 = scalar_select %p178, %s18, 1
        %p180 = scmp.lt.s32.totalorder %s177, 1
        %s181 = scalar_select %p180, %s177, 1
        %s182 = smul.addr %s179, 2
        %s183 = sadd.s32 %s181, %s182
        %s184 = smul.addr %s183, 4
        %s185 = scalar_lea.vmem %s0, %s184
        %s186 = smul.u32 2, %s19
      $region28: #{vector_quantizer_forward.1} parent=23 // pred_fallthru
        _
    $region24: #{vector_quantizer_forward.1} parent=5 // pred_fallthru
      _
    %p187 = scmp.le.s32.totalorder 1, %s11
    %p188 = scmp.lt.s32.totalorder %s11, 3
    %p189 = pnand %p187, %p188
    %p190 = pneg %p189
    // Predicated region
    $region29: #{vector_quantizer_forward.1} parent=5 // pred_check
      _
    $region30: #{vector_quantizer_forward.1} parent=5 // pred_check_branch
      %192 = sbr.rel (%p189) target = $region32
    $region31: #{vector_quantizer_forward.1} parent=5 // pred_region
      %s193 = ssub.s32 %s11, 1
      %s194 = smul.u32 2, %s21
      %p195 = scmp.lt.s32.totalorder %s20, 1
      %s196 = scalar_select %p195, %s20, 1
      %p197 = scmp.lt.s32.totalorder %s194, 1
      %s198 = scalar_select %p197, %s194, 1
      %s199 = smul.addr %s196, 2
      %s200 = sadd.s32 %s198, %s199
      %s201 = smul.addr %s200, 4
      %s202 = scalar_lea.vmem %s0, %s201
      %p203 = pneg %p51
      %p204 = pneg %p48
      %p205 = pneg %p72
      %p206 = pneg %p69
      %p207 = pneg %p93
      %p208 = pneg %p90
      %p209 = pneg %p121
      %p210 = pneg %p118
      %s211 = smul.u32 2, %s21
      %p212 = scmp.lt.s32.totalorder %s20, 1
      %s213 = scalar_select %p212, %s20, 1
      %p214 = scmp.lt.s32.totalorder %s211, 1
      %s215 = scalar_select %p214, %s211, 1
      %s216 = smul.addr %s213, 2
      %s217 = sadd.s32 %s215, %s216
      %s218 = smul.addr %s217, 4
      %s219 = scalar_lea.vmem %s3, %s218
      %p220 = pneg %p149
      %p221 = pneg %p146
      %p222 = scmp.lt.s32.totalorder %s20, 1
      %s223 = scalar_select %p222, %s20, 1
      %p224 = scmp.lt.s32.totalorder %s21, 0
      %s225 = scalar_select %p224, %s21, 0
      %s226 = sadd.s32 %s225, %s223
      %s227 = smul.addr %s226, 8
      %s228 = scalar_lea.vmem %s4, %s227
      %s229 = smul.u32 2, %s21
      %p230 = scmp.lt.s32.totalorder %s20, 1
      %s231 = scalar_select %p230, %s20, 1
      %p232 = scmp.lt.s32.totalorder %s229, 1
      %s233 = scalar_select %p232, %s229, 1
      %s234 = smul.addr %s231, 2
      %s235 = sadd.s32 %s233, %s234
      %s236 = smul.addr %s235, 4
      %s237 = scalar_lea.vmem %s0, %s236
      %s238 = smul.u32 2, %s21
      %s239 = smul.u32 2, %s21
      %p240 = scmp.lt.s32.totalorder %s20, 1
      %s241 = scalar_select %p240, %s20, 1
      %p242 = scmp.lt.s32.totalorder %s239, 1
      %s243 = scalar_select %p242, %s239, 1
      %s244 = smul.addr %s241, 2
      %s245 = sadd.s32 %s243, %s244
      %s246 = smul.addr %s245, 4
      %s247 = scalar_lea.vmem %s3, %s246
      %s248 = smul.u32 2, %s21
      %p249 = scmp.lt.s32.totalorder %s20, 1
      %s250 = scalar_select %p249, %s20, 1
      %p251 = scmp.lt.s32.totalorder %s21, 0
      %s252 = scalar_select %p251, %s21, 0
      %s253 = sadd.s32 %s252, %s250
      %s254 = smul.addr %s253, 8
      %s255 = scalar_lea.vmem %s4, %s254
      %v256 = vld [vmem:[%s237] sm:$0xff]
      %v257 = vld [vmem:[%s1] sm:$0xff]
      %v258 = vld [vmem:[%s2] sm:$0xff]
      %v260 = vcombine.high %v256, %v256
      %vm261 = vcmask 31744
      %v263 = vsel %vm261, %v257, 0
      %vm265 = vcmask 1043456
      %v266 = vsel %vm265, %v256, 0
      %v268 = vsel %vm265, %v260, 0
      %270 = vmatprep.subr.mxu0 %v268
      %271 = vmatpush1.msra.mxu0 %v266
      %272 = vmatprep.subr.mxu0 0.0
      %273 = vmatpush1.msra.mxu0 0.0
      %274 = vmatprep.subr.mxu0 0.0
      %275 = vmatpush1.msra.mxu0 0.0
      %276 = vmatprep.subr.mxu0 0.0
      %277 = vmatpush1.msra.mxu0 0.0
      %278 = vmatprep.subr.mxu0 0.0
      %279 = vmatpush1.msra.mxu0 0.0
      %280 = vmatprep.subr.mxu0 0.0
      %281 = vmatpush1.msra.mxu0 0.0
      %282 = vmatprep.subr.mxu0 0.0
      %283 = vmatpush1.msra.mxu0 0.0
      %284 = vmatprep.subr.mxu0 0.0
      %285 = vmatpush1.msra.mxu0 0.0
      %286 = vmatprep.subr.mxu0 0.0
      %287 = vmatpush1.msra.mxu0 0.0
      %288 = vmatprep.subr.mxu0 0.0
      %289 = vmatpush1.msra.mxu0 0.0
      %290 = vmatprep.subr.mxu0 0.0
      %291 = vmatpush1.msra.mxu0 0.0
      %292 = vmatprep.subr.mxu0 0.0
      %293 = vmatpush1.msra.mxu0 0.0
      %294 = vmatprep.subr.mxu0 0.0
      %295 = vmatpush1.msra.mxu0 0.0
      %296 = vmatprep.subr.mxu0 0.0
      %297 = vmatpush1.msra.mxu0 0.0
      %298 = vmatprep.subr.mxu0 0.0
      %299 = vmatpush1.msra.mxu0 0.0
      %300 = vmatprep.subr.mxu0 0.0
      %301 = vmatpush1.msra.mxu0 0.0
      %302 = vmatprep.subr.mxu0 0.0
      %303 = vmatpush1.msra.mxu0 0.0
      %304 = vmatprep.subr.mxu0 0.0
      %305 = vmatpush1.msra.mxu0 0.0
      %306 = vmatprep.subr.mxu0 0.0
      %307 = vmatpush1.msra.mxu0 0.0
      %308 = vmatprep.subr.mxu0 0.0
      %309 = vmatpush1.msra.mxu0 0.0
      %310 = vmatprep.subr.mxu0 0.0
      %311 = vmatpush1.msra.mxu0 0.0
      %312 = vmatprep.subr.mxu0 0.0
      %313 = vmatpush1.msra.mxu0 0.0
      %314 = vmatprep.subr.mxu0 0.0
      %315 = vmatpush1.msra.mxu0 0.0
      %316 = vmatprep.subr.mxu0 0.0
      %317 = vmatpush1.msra.mxu0 0.0
      %318 = vmatprep.subr.mxu0 0.0
      %319 = vmatpush1.msra.mxu0 0.0
      %320 = vmatprep.subr.mxu0 0.0
      %321 = vmatpush1.msra.mxu0 0.0
      %322 = vmatprep.subr.mxu0 0.0
      %323 = vmatpush1.msra.mxu0 0.0
      %324 = vmatprep.subr.mxu0 0.0
      %325 = vmatpush1.msra.mxu0 0.0
      %326 = vmatprep.subr.mxu0 0.0
      %327 = vmatpush1.msra.mxu0 0.0
      %328 = vmatprep.subr.mxu0 0.0
      %329 = vmatpush1.msra.mxu0 0.0
      %330 = vmatprep.subr.mxu0 0.0
      %331 = vmatpush1.msra.mxu0 0.0
      %332 = vmatprep.subr.mxu0 0.0
      %333 = vmatpush1.msra.mxu0 0.0
      %334 = vmatprep.mubr.f32.mxu0 0.0
      %335 = vmatmul.mubr.f32.gmra.mrb[0].mxu0 %v263
      %v336 = vpop.f32.mrb[0].mxu0
      %v337 = vadd.f32 0.0, %v336
      %v338 = vpop.f32.mrb[0].mxu0
      %v339 = vadd.f32 0.0, %v338
      %340 = vdwg.mxu0
      %342 = vset.pattern.permute.xlu0 0
      %343 = vperm.xlu0 %342, %v258
      %v344 = vpop.permute.xlu0 %343
      %v346 = vsub.f32 %v344, %v337
      %v347 = vsub.f32 %v344, %v339
      %v348 = vlaneseq
      %v349 = vshrl.u32 %v348, 7
      %v350 = vrot.slane %v346, 4
      %v351 = vmin.f32 %v346, %v350
      %v352 = vrot.slane %v351, 2
      %v353 = vmin.f32 %v351, %v352
      %v354 = vrot.slane %v353, 1
      %v355 = vmin.f32 %v353, %v354
      %v356 = vrot.slane %v347, 4
      %v357 = vmin.f32 %v347, %v356
      %v358 = vrot.slane %v357, 2
      %v359 = vmin.f32 %v357, %v358
      %v360 = vrot.slane %v359, 1
      %v361 = vmin.f32 %v359, %v360
      %vm362 = vcmp.eq.f32.partialorder %v346, %v355
      %vm363 = vcmp.eq.f32.partialorder %v347, %v361
      %v364 = vsel %vm362, %v349, 8
      %v365 = vsel %vm363, %v349, 8
      %v366 = vrot.slane %v364, 4
      %vm367 = vcmp.lt.s32.totalorder %v364, %v366
      %v368 = vsel %vm367, %v364, %v366
      %v369 = vrot.slane %v368, 2
      %vm370 = vcmp.lt.s32.totalorder %v368, %v369
      %v371 = vsel %vm370, %v368, %v369
      %v372 = vrot.slane %v371, 1
      %vm373 = vcmp.lt.s32.totalorder %v371, %v372
      %v374 = vsel %vm373, %v371, %v372
      %v375 = vrot.slane %v365, 4
      %vm376 = vcmp.lt.s32.totalorder %v365, %v375
      %v377 = vsel %vm376, %v365, %v375
      %v378 = vrot.slane %v377, 2
      %vm379 = vcmp.lt.s32.totalorder %v377, %v378
      %v380 = vsel %vm379, %v377, %v378
      %v381 = vrot.slane %v380, 1
      %vm382 = vcmp.lt.s32.totalorder %v380, %v381
      %v383 = vsel %vm382, %v380, %v381
      %vm384 = vcmp.eq.s32.totalorder %v349, %v374
      %vm385 = vcmp.eq.s32.totalorder %v349, %v383
      %v386 = vsel %vm384, 1, 0
      %v387 = vsel %vm385, 1, 0
      %v388 = vcvt.s32.f32 %v386
      %v389 = vcvt.s32.f32 %v387
      %390 = vxpose.xlu0.b32.start [1/16] %v257, 128
      %391 = vxpose.xlu0.b32.cont [2/16] 0.0, 128
      %392 = vxpose.xlu0.b32.cont [3/16] 0.0, 128
      %393 = vxpose.xlu0.b32.cont [4/16] 0.0, 128
      %394 = vxpose.xlu0.b32.cont [5/16] 0.0, 128
      %395 = vxpose.xlu0.b32.cont [6/16] 0.0, 128
      %396 = vxpose.xlu0.b32.cont [7/16] 0.0, 128
      %397 = vxpose.xlu0.b32.cont [8/16] 0.0, 128
      %398 = vxpose.xlu0.b32.cont [9/16] 0.0, 128
      %399 = vxpose.xlu0.b32.cont [10/16] 0.0, 128
      %400 = vxpose.xlu0.b32.cont [11/16] 0.0, 128
      %401 = vxpose.xlu0.b32.cont [12/16] 0.0, 128
      %402 = vxpose.xlu0.b32.cont [13/16] 0.0, 128
      %403 = vxpose.xlu0.b32.cont [14/16] 0.0, 128
      %404 = vxpose.xlu0.b32.cont [15/16] 0.0, 128
      %405 = vxpose.xlu0.b32.end [16/16] 0.0, 128
      %v406 = vpop.trf.xlu0
      %v407 = vpop.trf.xlu0
      %v408 = vpop.trf.xlu0
      %v409 = vpop.trf.xlu0
      %v410 = vpop.trf.xlu0
      %v411 = vpop.trf.xlu0
      %v412 = vpop.trf.xlu0
      %v413 = vpop.trf.xlu0
      %v414 = vpop.trf.xlu0
      %v415 = vpop.trf.xlu0
      %v416 = vpop.trf.xlu0
      %v417 = vpop.trf.xlu0
      %v418 = vpop.trf.xlu0
      %v419 = vpop.trf.xlu0
      %v420 = vpop.trf.xlu0
      %v421 = vpop.trf.xlu0
      %vm422 = vcmask 64512
      %v424 = vsel %vm422, %v406, 0
      %426 = vmatprep.subr.mxu0 %v389
      %427 = vmatpush1.msra.mxu0 %v388
      %428 = vmatprep.subr.mxu0 0.0
      %429 = vmatpush1.msra.mxu0 0.0
      %430 = vmatprep.subr.mxu0 0.0
      %431 = vmatpush1.msra.mxu0 0.0
      %432 = vmatprep.subr.mxu0 0.0
      %433 = vmatpush1.msra.mxu0 0.0
      %434 = vmatprep.subr.mxu0 0.0
      %435 = vmatpush1.msra.mxu0 0.0
      %436 = vmatprep.subr.mxu0 0.0
      %437 = vmatpush1.msra.mxu0 0.0
      %438 = vmatprep.subr.mxu0 0.0
      %439 = vmatpush1.msra.mxu0 0.0
      %440 = vmatprep.subr.mxu0 0.0
      %441 = vmatpush1.msra.mxu0 0.0
      %442 = vmatprep.subr.mxu0 0.0
      %443 = vmatpush1.msra.mxu0 0.0
      %444 = vmatprep.subr.mxu0 0.0
      %445 = vmatpush1.msra.mxu0 0.0
      %446 = vmatprep.subr.mxu0 0.0
      %447 = vmatpush1.msra.mxu0 0.0
      %448 = vmatprep.subr.mxu0 0.0
      %449 = vmatpush1.msra.mxu0 0.0
      %450 = vmatprep.subr.mxu0 0.0
      %451 = vmatpush1.msra.mxu0 0.0
      %452 = vmatprep.subr.mxu0 0.0
      %453 = vmatpush1.msra.mxu0 0.0
      %454 = vmatprep.subr.mxu0 0.0
      %455 = vmatpush1.msra.mxu0 0.0
      %456 = vmatprep.subr.mxu0 0.0
      %457 = vmatpush1.msra.mxu0 0.0
      %458 = vmatprep.subr.mxu0 0.0
      %459 = vmatpush1.msra.mxu0 0.0
      %460 = vmatprep.subr.mxu0 0.0
      %461 = vmatpush1.msra.mxu0 0.0
      %462 = vmatprep.subr.mxu0 0.0
      %463 = vmatpush1.msra.mxu0 0.0
      %464 = vmatprep.subr.mxu0 0.0
      %465 = vmatpush1.msra.mxu0 0.0
      %466 = vmatprep.subr.mxu0 0.0
      %467 = vmatpush1.msra.mxu0 0.0
      %468 = vmatprep.subr.mxu0 0.0
      %469 = vmatpush1.msra.mxu0 0.0
      %470 = vmatprep.subr.mxu0 0.0
      %471 = vmatpush1.msra.mxu0 0.0
      %472 = vmatprep.subr.mxu0 0.0
      %473 = vmatpush1.msra.mxu0 0.0
      %474 = vmatprep.subr.mxu0 0.0
      %475 = vmatpush1.msra.mxu0 0.0
      %476 = vmatprep.subr.mxu0 0.0
      %477 = vmatpush1.msra.mxu0 0.0
      %478 = vmatprep.subr.mxu0 0.0
      %479 = vmatpush1.msra.mxu0 0.0
      %480 = vmatprep.subr.mxu0 0.0
      %481 = vmatpush1.msra.mxu0 0.0
      %482 = vmatprep.subr.mxu0 0.0
      %483 = vmatpush1.msra.mxu0 0.0
      %484 = vmatprep.subr.mxu0 0.0
      %485 = vmatpush1.msra.mxu0 0.0
      %486 = vmatprep.subr.mxu0 0.0
      %487 = vmatpush1.msra.mxu0 0.0
      %488 = vmatprep.subr.mxu0 0.0
      %489 = vmatpush1.msra.mxu0 0.0
      %490 = vmatprep.mubr.f32.mxu0 0.0
      %491 = vmatmul.mubr.f32.gmra.mrb[0].mxu0 %v424
      %v492 = vpop.f32.mrb[0].mxu0
      %v493 = vadd.f32 0.0, %v492
      %v494 = vpop.f32.mrb[0].mxu0
      %v495 = vadd.f32 0.0, %v494
      %496 = vdwg.mxu0
      %v499 = vcombine.low %v493, %v495
      %501 = vst [vmem:[%s247] sm:$0xff] %v499
      %v503 = vsub.f32 %v493, %v256
      %v504 = vsub.f32 %v495, %v260
      %v505 = vmul.f32 %v503, %v503
      %v506 = vmul.f32 %v504, %v504
      %v507 = vsel %vm265, %v505, 0.0
      %v508 = vrot.slane %v507, 4
      %v509 = vadd.f32 %v507, %v508
      %v510 = vrot.slane %v509, 2
      %v511 = vadd.f32 %v509, %v510
      %v512 = vrot.slane %v511, 1
      %v513 = vadd.f32 %v511, %v512
      %v514 = vsel %vm265, %v506, 0.0
      %v515 = vrot.slane %v514, 4
      %v516 = vadd.f32 %v514, %v515
      %v517 = vrot.slane %v516, 2
      %v518 = vadd.f32 %v516, %v517
      %v519 = vrot.slane %v518, 1
      %v520 = vadd.f32 %v518, %v519
      %v521 = vadd.f32 %v513, %v520
      %522 = vadd.xlane.f32.xlu0 %v521
      %v523 = vpop.xlane.xlu0 %522
      %524 = vst [vmem:[%s255] sm:$0xff] %v523
      %s525 = smul.u32 2, %s21
      %p526 = scmp.lt.s32.totalorder %s20, 1
      %s527 = scalar_select %p526, %s20, 1
      %p528 = scmp.lt.s32.totalorder %s525, 1
      %s529 = scalar_select %p528, %s525, 1
      %s530 = smul.addr %s527, 2
      %s531 = sadd.s32 %s529, %s530
      %s532 = smul.addr %s531, 4
      %s533 = scalar_lea.vmem %s3, %s532
      %p534 = scmp.lt.s32.totalorder %s20, 1
      %s535 = scalar_select %p534, %s20, 1
      %p536 = scmp.lt.s32.totalorder %s21, 0
      %s537 = scalar_select %p536, %s21, 0
      %s538 = sadd.s32 %s537, %s535
      %s539 = smul.addr %s538, 8
      %s540 = scalar_lea.vmem %s4, %s539
      // Predicated region
      $region33: #{vector_quantizer_forward.1} parent=31 // pred_check
        %p541 = pneg %p118
      $region34: #{vector_quantizer_forward.1} parent=31 // pred_check_branch
        %543 = sbr.rel (%p541) target = $region36
      $region35: #{vector_quantizer_forward.1} parent=31 // pred_region
        %s544 = smul.u32 2, %s21
      $region36: #{vector_quantizer_forward.1} parent=31 // pred_fallthru
        _
      // Predicated region
      $region37: #{vector_quantizer_forward.1} parent=31 // pred_check
        %p545 = pneg %p146
      $region38: #{vector_quantizer_forward.1} parent=31 // pred_check_branch
        %547 = sbr.rel (%p545) target = $region40
      $region39: #{vector_quantizer_forward.1} parent=31 // pred_region
        _
      $region40: #{vector_quantizer_forward.1} parent=31 // pred_fallthru
        _
    $region32: #{vector_quantizer_forward.1} parent=5 // pred_fallthru
      _
    %p548 = scmp.le.s32.totalorder 2, %s11
    // Predicated region
    $region41: #{vector_quantizer_forward.1} parent=5 // pred_check
      %p549 = pneg %p548
    $region42: #{vector_quantizer_forward.1} parent=5 // pred_check_branch
      %551 = sbr.rel (%p549) target = $region44
    $region43: #{vector_quantizer_forward.1} parent=5 // pred_region
      %s552 = ssub.s32 %s11, 2
      // Predicated region
      $region45: #{vector_quantizer_forward.1} parent=43 // pred_check
        %p553 = pneg %p124
      $region46: #{vector_quantizer_forward.1} parent=43 // pred_check_branch
        %555 = sbr.rel (%p553) target = $region48
      $region47: #{vector_quantizer_forward.1} parent=43 // pred_region
        %s556 = smul.u32 2, %s23
        %p557 = scmp.lt.s32.totalorder %s22, 1
        %s558 = scalar_select %p557, %s22, 1
        %p559 = scmp.lt.s32.totalorder %s556, 1
        %s560 = scalar_select %p559, %s556, 1
        %s561 = smul.addr %s558, 2
        %s562 = sadd.s32 %s560, %s561
        %s563 = smul.addr %s562, 4
        %s564 = scalar_lea.vmem %s3, %s563
      $region48: #{vector_quantizer_forward.1} parent=43 // pred_fallthru
        _
      // Predicated region
      $region49: #{vector_quantizer_forward.1} parent=43 // pred_check
        %p565 = pneg %p152
      $region50: #{vector_quantizer_forward.1} parent=43 // pred_check_branch
        %567 = sbr.rel (%p565) target = $region52
      $region51: #{vector_quantizer_forward.1} parent=43 // pred_region
        %p568 = scmp.lt.s32.totalorder %s22, 1
        %s569 = scalar_select %p568, %s22, 1
        %p570 = scmp.lt.s32.totalorder %s23, 0
        %s571 = scalar_select %p570, %s23, 0
        %s572 = sadd.s32 %s571, %s569
        %s573 = smul.addr %s572, 8
        %s574 = scalar_lea.vmem %s4, %s573
      $region52: #{vector_quantizer_forward.1} parent=43 // pred_fallthru
        _
    $region44: #{vector_quantizer_forward.1} parent=5 // pred_fallthru
      _
  $region6: #{vector_quantizer_forward.1} parent=0 // loop_footer
    %s15 = sadd.s32 1, %s11
  $region7: #{vector_quantizer_forward.1} parent=0 // loop_footer_branch
    %10 = sbr.rel target = $region3
  $region8: #{vector_quantizer_forward.1} parent=0 // loop_exit
    _

</llo_original>
